<compile_context>
chip_gen: v6e
topology: v6e:2x2x1
jax: 0.10.0
libtpu: 0.0.40
codegen_flags: <defaults>
</compile_context>

<pallas_src>
from functools import partial

import numpy as np
import jax
import jax.numpy as jnp
from jax.experimental import pallas as pl
from jax.experimental.pallas import tpu as pltpu

EPS = 1e-5


def _make_dense_block_kernel(in_ch, unit_ksize, unit_ch, unit_count, W0, S0,
                             C_pad):
    """Builds the fused DenseBlock kernel body for a static configuration."""
    k1, k2 = unit_ksize
    c0, c1 = unit_ch
    shrink = (k1 - 1) + (k2 - 1)          # spatial shrink per dense unit
    crop = shrink // 2                    # crop_to_shape top/left offset
    d_crop = crop * (W0 + 1)              # flat (row, col) crop shift
    n_vec = 3 * unit_count + 2            # columns in the vector bank

    # Static column offsets into the packed w1 bank (one slab per unit).
    w1_cols, acc = [], 0
    for u in range(unit_count):
        w = k1 * k1 * (in_ch + u * c1)
        w1_cols.append((acc, w))
        acc += w
    k2cols = k2 * k2 * c0                 # per-unit slab width in the w2 bank

    def _im2col(x, k, out_len):
        """Stack the k*k shifted taps along sublanes; rows ordered (di,dj,c)."""
        if k == 1:
            return x[:, :out_len]
        return jnp.concatenate(
            [x[:, di * W0 + dj: di * W0 + dj + out_len]
             for di in range(k) for dj in range(k)],
            axis=0)

    def kernel(x_ref, vec_ref, w1_ref, w2_ref, o_ref):
        # o_ref doubles as the persistent accumulator for this batch element:
        # (C_pad, S0), every channel row top-left anchored in original input
        # flat coordinates.  Zero-init keeps padding rows/lanes deterministic
        # (and keeps stale VMEM NaNs out of the final BN pass).
        o_ref[...] = jnp.zeros((C_pad, S0), jnp.float32)
        o_ref[0:in_ch, :] = x_ref[...].astype(jnp.float32)

        vecs = vec_ref[...]               # (C_pad, n_vec) tiny param bank
        w1all = w1_ref[...]               # (c0, sum_u k1*k1*C_u)
        w2all = w2_ref[...]               # (c1, unit_count*k2*k2*c0)

        for u in range(unit_count):
            cu = in_ch + u * c1           # channels accumulated so far
            off = u * d_crop              # cumulative crop as a lane offset
            L = S0 - 2 * u * d_crop       # current flat window length

            # Aligned full-width row load, then a value-level lane slice at
            # the tracked offset (no physical shift of the resident map).
            prev = o_ref[0:cu, :][:, off:off + L]

            # preact_bna: BN1 (folded scale/shift) + ReLU.
            s1 = vecs[0:cu, 3 * u:3 * u + 1]
            b1 = vecs[0:cu, 3 * u + 1:3 * u + 2]
            t = jnp.maximum(prev * s1 + b1, 0.0)

            # conv1 (valid) with conv1/bn folded into weights + bias, + ReLU.
            len1 = L - (k1 - 1) * (W0 + 1)
            w1m = w1all[:, w1_cols[u][0]: w1_cols[u][0] + w1_cols[u][1]]
            y1 = jnp.dot(w1m, _im2col(t, k1, len1),
                         preferred_element_type=jnp.float32)
            bias2 = vecs[0:c0, 3 * u + 2:3 * u + 3]
            y1 = jnp.maximum(y1 + bias2, 0.0)                 # (c0, len1)

            # conv2 (valid): single weights-stationary dot, K = k2*k2*c0,
            # N = flat spatial (lane-dense).
            len2 = len1 - (k2 - 1) * (W0 + 1)
            w2m = w2all[:, u * k2cols:(u + 1) * k2cols]
            new = jnp.dot(w2m, _im2col(y1, k2, len2),
                          preferred_element_type=jnp.float32)  # (c1, len2)

            # crop_to_shape + channel concat, done by bookkeeping only:
            # `new` belongs at input-coordinate lane offset off + d_crop.
            # Build a full-width row (zeros outside the valid window) so the
            # store stays lane-dense and lane-aligned.
            left = off + d_crop
            right = S0 - left - len2
            pieces = []
            if left > 0:
                pieces.append(jnp.zeros((c1, left), jnp.float32))
            pieces.append(new)
            if right > 0:
                pieces.append(jnp.zeros((c1, right), jnp.float32))
            new_row = pieces[0] if len(pieces) == 1 else \
                jnp.concatenate(pieces, axis=1)
            o_ref[cu:cu + c1, :] = new_row

        # blk_bna: folded BN + ReLU over the whole padded map
        # (padded channels have scale=shift=0 and data=0 -> stay 0).
        blk_s = vecs[:, n_vec - 2:n_vec - 1]
        blk_b = vecs[:, n_vec - 1:n_vec]
        o_ref[...] = jnp.maximum(o_ref[...] * blk_s + blk_b, 0.0)

    return kernel


def _fold_bn(gamma, beta, mean, var):
    scale = gamma / jnp.sqrt(var + EPS)
    shift = beta - mean * scale
    return scale, shift


def _prep_kernel_operands(params, unit_ksize, unit_ch, C_pad):
    """Pack params into 3 small banks (vector bank, w1 bank, w2 bank).

    Conv weights become (Cout, k*k*Cin) with columns ordered (di, dj, cin) to
    match the im2col row order; conv1/bn is folded into w1 + a bias column.
    """
    k1, k2 = unit_ksize
    c0, c1 = unit_ch

    def padcol(v):
        v = v.reshape(-1)
        return jnp.pad(v, (0, C_pad - v.shape[0])).reshape(C_pad, 1)

    vec_cols, w1_parts, w2_parts = [], [], []
    for u in params["units"]:
        w1 = u["w1"]                                   # HWIO (k1,k1,Cin,C0)
        w1m = jnp.transpose(w1, (3, 0, 1, 2)).reshape(c0, -1)
        w1m = w1m * u["s2"].reshape(-1, 1)             # fold conv1/bn scale
        w2 = u["w2"]                                   # HWIO (k2,k2,C0,C1)
        w2m = jnp.transpose(w2, (3, 0, 1, 2)).reshape(c1, -1)
        vec_cols += [padcol(u["s1"]), padcol(u["b1"]), padcol(u["b2"])]
        w1_parts.append(w1m)
        w2_parts.append(w2m)
    vec_cols += [padcol(params["blk_s"]), padcol(params["blk_b"])]
    vec_bank = jnp.concatenate(vec_cols, axis=1)       # (C_pad, 3*U+2)
    w1_bank = jnp.concatenate(w1_parts, axis=1)        # (c0, sum k1*k1*C_u)
    w2_bank = jnp.concatenate(w2_parts, axis=1)        # (c1, U*k2*k2*c0)
    return vec_bank, w1_bank, w2_bank


@partial(jax.jit, static_argnames=("unit_ksize", "unit_ch", "unit_count"))
def dense_block_forward(x_nchw, params, *, unit_ksize, unit_ch, unit_count):
    """DenseBlock.forward (inference).  Accepts/returns NCHW like PyTorch."""
    N, in_ch, H0, W0 = x_nchw.shape
    k1, k2 = unit_ksize
    _, c1 = unit_ch
    shrink = (k1 - 1) + (k2 - 1)
    crop = shrink // 2
    S0 = H0 * W0
    H_out = H0 - unit_count * shrink
    W_out = W0 - unit_count * shrink
    C_out = in_ch + unit_count * c1
    C_pad = -(-C_out // 8) * 8                         # sublane-dense channels
    assert H_out > 0 and W_out > 0, "input too small for this DenseBlock"
    assert k1 >= 1 and k2 >= 1
    # Flat-shift validity: stride-1, padding-0 convs only (what the module uses).

    vec_bank, w1_bank, w2_bank = _prep_kernel_operands(
        params, unit_ksize, unit_ch, C_pad)
    x_flat = x_nchw.reshape(N, in_ch, S0)              # NCHW -> (N, C, H*W)

    kernel = _make_dense_block_kernel(
        in_ch, unit_ksize, unit_ch, unit_count, W0, S0, C_pad)

    out_padded = pl.pallas_call(
        kernel,
        out_shape=jax.ShapeDtypeStruct((N, C_pad, S0), jnp.float32),
        grid=(N,),
        in_specs=[
            pl.BlockSpec((None, in_ch, S0), lambda n: (n, 0, 0)),
            pl.BlockSpec(vec_bank.shape, lambda n: (0, 0)),
            pl.BlockSpec(w1_bank.shape, lambda n: (0, 0)),
            pl.BlockSpec(w2_bank.shape, lambda n: (0, 0)),
        ],
        out_specs=pl.BlockSpec((None, C_pad, S0), lambda n: (n, 0, 0)),
        compiler_params=pltpu.CompilerParams(
            dimension_semantics=("parallel",)),        # 2 TCs on v7x
    )(x_flat, vec_bank, w1_bank, w2_bank)

    # Output is stored in original input coordinates with full W0 stride:
    # free reshape + one slice (no pad / re-layout).
    oc = unit_count * crop
    out = out_padded.reshape(N, C_pad, H0, W0)[:, :C_out,
                                               oc:oc + H_out, oc:oc + W_out]
    return out


def init_dense_block_params(key, in_ch, unit_ksize, unit_ch, unit_count):
    """Deterministic synthetic params (shapes match the PyTorch module)."""
    k1, k2 = unit_ksize
    c0, c1 = unit_ch
    units = []
    unit_in_ch = in_ch
    for _ in range(unit_count):
        key, *ks = jax.random.split(key, 11)
        g1 = 1.0 + 0.1 * jax.random.normal(ks[0], (unit_in_ch,), jnp.float32)
        be1 = 0.1 * jax.random.normal(ks[1], (unit_in_ch,), jnp.float32)
        m1 = 0.1 * jax.random.normal(ks[2], (unit_in_ch,), jnp.float32)
        v1 = 0.9 + 0.2 * jax.random.uniform(ks[3], (unit_in_ch,), jnp.float32)
        # conv1 weight (PyTorch OIHW), kaiming_normal fan_out
        w1 = jax.random.normal(ks[4], (c0, unit_in_ch, k1, k1), jnp.float32) \
            * np.sqrt(2.0 / (c0 * k1 * k1))
        g2 = 1.0 + 0.1 * jax.random.normal(ks[5], (c0,), jnp.float32)
        be2 = 0.1 * jax.random.normal(ks[6], (c0,), jnp.float32)
        m2 = 0.1 * jax.random.normal(ks[7], (c0,), jnp.float32)
        v2 = 0.9 + 0.2 * jax.random.uniform(ks[8], (c0,), jnp.float32)
        w2 = jax.random.normal(ks[9], (c1, c0, k2, k2), jnp.float32) \
            * np.sqrt(2.0 / (c1 * k2 * k2))
        s1, sh1 = _fold_bn(g1, be1, m1, v1)
        s2, sh2 = _fold_bn(g2, be2, m2, v2)
        units.append(dict(
            s1=s1, b1=sh1, w1=jnp.transpose(w1, (2, 3, 1, 0)),   # OIHW -> HWIO
            s2=s2, b2=sh2, w2=jnp.transpose(w2, (2, 3, 1, 0)),
        ))
        unit_in_ch += c1
    key, *ks = jax.random.split(key, 5)
    g = 1.0 + 0.1 * jax.random.normal(ks[0], (unit_in_ch,), jnp.float32)
    be = 0.1 * jax.random.normal(ks[1], (unit_in_ch,), jnp.float32)
    m = 0.1 * jax.random.normal(ks[2], (unit_in_ch,), jnp.float32)
    v = 0.9 + 0.2 * jax.random.uniform(ks[3], (unit_in_ch,), jnp.float32)
    s, sh = _fold_bn(g, be, m, v)
    return dict(units=units, blk_s=s, blk_b=sh)


def _ref_forward(x_nchw, params):
    """Pure-JAX reference (lax.conv, HIGHEST precision) with the same params."""
    def conv(x, w):
        return jax.lax.conv_general_dilated(
            x, w, (1, 1), "VALID",
            dimension_numbers=("NHWC", "HWIO", "NHWC"),
            precision=jax.lax.Precision.HIGHEST)
    prev = jnp.transpose(x_nchw, (0, 2, 3, 1))
    for p in params["units"]:
        t = jnp.maximum(prev * p["s1"] + p["b1"], 0.0)
        t = conv(t, p["w1"])
        t = jnp.maximum(t * p["s2"] + p["b2"], 0.0)
        new = conv(t, p["w2"])
        h2, w2 = new.shape[1], new.shape[2]
        ct = (prev.shape[1] - h2) // 2
        cl = (prev.shape[2] - w2) // 2
        prev = jnp.concatenate(
            [prev[:, ct:ct + h2, cl:cl + w2, :], new], axis=-1)
    out = jnp.maximum(prev * params["blk_s"] + params["blk_b"], 0.0)
    return jnp.transpose(out, (0, 3, 1, 2))


if __name__ == "__main__":
    key = jax.random.PRNGKey(0)
    k_x, k_p = jax.random.split(key)

    # DenseBlock(in_ch=4, unit_ksize=[1, 3], unit_ch=[8, 4], unit_count=2)
    in_ch, unit_ksize, unit_ch, unit_count = 4, (1, 3), (8, 4), 2
    x = jax.random.normal(k_x, (2, in_ch, 16, 16), jnp.float32)  # NCHW

    params = init_dense_block_params(k_p, in_ch, unit_ksize, unit_ch,
                                     unit_count)

    out = jax.block_until_ready(dense_block_forward(
        x, params, unit_ksize=unit_ksize, unit_ch=unit_ch,
        unit_count=unit_count))
    ref = jax.block_until_ready(_ref_forward(x, params))

    expected_out_ch = in_ch + unit_count * unit_ch[-1]           # out_ch()
    assert out.shape == (2, expected_out_ch, 12, 12), out.shape
    np.testing.assert_allclose(np.asarray(out), np.asarray(ref),
                               rtol=5e-4, atol=5e-4)
    print("KERNEL_OK")
</pallas_src>

<mosaic_0001>
module attributes {stable_mosaic.version = 11 : i64} {
  func.func @kernel(%arg0: i32, %arg1: memref<1x4x256xf32, #tpu.memory_space<vmem>>, %arg2: memref<16x8xf32, #tpu.memory_space<vmem>>, %arg3: memref<8x12xf32, #tpu.memory_space<vmem>>, %arg4: memref<4x144xf32, #tpu.memory_space<vmem>>, %arg5: memref<1x16x256xf32, #tpu.memory_space<vmem>>) attributes {dimension_semantics = [#tpu.dimension_semantics<parallel>], iteration_bounds = array<i64: 2>, scalar_prefetch = 0 : i64, scratch_operands = 0 : i64, tpu.core_type = #tpu.core_type<tc>, window_params = [{transform_indices = @transform_0, window_bounds = array<i64: 1, 4, 256>}, {pipeline_mode = #tpu.pipeline_mode<synchronous>, transform_indices = @transform_1, window_bounds = array<i64: 16, 8>}, {pipeline_mode = #tpu.pipeline_mode<synchronous>, transform_indices = @transform_2, window_bounds = array<i64: 8, 12>}, {pipeline_mode = #tpu.pipeline_mode<synchronous>, transform_indices = @transform_3, window_bounds = array<i64: 4, 144>}, {transform_indices = @transform_4, window_bounds = array<i64: 1, 16, 256>}]} {
    %cst = arith.constant 0.000000e+00 : f32
    %0 = vector.broadcast %cst : f32 to vector<16x256xf32>
    %c0 = arith.constant 0 : index
    %c0_0 = arith.constant 0 : index
    %c0_1 = arith.constant 0 : index
    %1 = vector.load %arg5[%c0, %c0_0, %c0_1] : memref<1x16x256xf32, #tpu.memory_space<vmem>>, vector<1x16x256xf32>
    %2 = vector.shape_cast %1 : vector<1x16x256xf32> to vector<16x256xf32>
    %3 = vector.shape_cast %0 : vector<16x256xf32> to vector<1x16x256xf32>
    tpu.vector_store %arg5[%c0, %c0_0, %c0_1], %3 {strides = array<i32>} : memref<1x16x256xf32, #tpu.memory_space<vmem>>, vector<1x16x256xf32>,
    %c0_2 = arith.constant 0 : index
    %c0_3 = arith.constant 0 : index
    %c0_4 = arith.constant 0 : index
    %4 = vector.load %arg1[%c0_2, %c0_3, %c0_4] : memref<1x4x256xf32, #tpu.memory_space<vmem>>, vector<1x4x256xf32>
    %5 = vector.shape_cast %4 : vector<1x4x256xf32> to vector<4x256xf32>
    %c0_5 = arith.constant 0 : index
    %c0_6 = arith.constant 0 : index
    %c0_7 = arith.constant 0 : index
    %6 = vector.load %arg5[%c0_5, %c0_6, %c0_7] : memref<1x16x256xf32, #tpu.memory_space<vmem>>, vector<1x4x256xf32>
    %7 = vector.shape_cast %6 : vector<1x4x256xf32> to vector<4x256xf32>
    %8 = vector.shape_cast %5 : vector<4x256xf32> to vector<1x4x256xf32>
    tpu.vector_store %arg5[%c0_5, %c0_6, %c0_7], %8 {strides = array<i32>} : memref<1x16x256xf32, #tpu.memory_space<vmem>>, vector<1x4x256xf32>,
    %c0_8 = arith.constant 0 : index
    %c0_9 = arith.constant 0 : index
    %9 = vector.load %arg2[%c0_8, %c0_9] : memref<16x8xf32, #tpu.memory_space<vmem>>, vector<16x8xf32>
    %c0_10 = arith.constant 0 : index
    %c0_11 = arith.constant 0 : index
    %10 = vector.load %arg3[%c0_10, %c0_11] : memref<8x12xf32, #tpu.memory_space<vmem>>, vector<8x12xf32>
    %c0_12 = arith.constant 0 : index
    %c0_13 = arith.constant 0 : index
    %11 = vector.load %arg4[%c0_12, %c0_13] : memref<4x144xf32, #tpu.memory_space<vmem>>, vector<4x144xf32>
    %c0_14 = arith.constant 0 : index
    %c0_15 = arith.constant 0 : index
    %c0_16 = arith.constant 0 : index
    %12 = vector.load %arg5[%c0_14, %c0_15, %c0_16] : memref<1x16x256xf32, #tpu.memory_space<vmem>>, vector<1x4x256xf32>
    %13 = vector.shape_cast %12 : vector<1x4x256xf32> to vector<4x256xf32>
    %14 = vector.extract_strided_slice %9 {offsets = [0, 0], sizes = [4, 1], strides = [1, 1]} : vector<16x8xf32> to vector<4x1xf32>
    %15 = vector.extract_strided_slice %9 {offsets = [0, 1], sizes = [4, 1], strides = [1, 1]} : vector<16x8xf32> to vector<4x1xf32>
    %16 = vector.broadcast %14 : vector<4x1xf32> to vector<4x256xf32>
    %17 = arith.mulf %13, %16 : vector<4x256xf32>
    %18 = vector.broadcast %15 : vector<4x1xf32> to vector<4x256xf32>
    %19 = arith.addf %17, %18 : vector<4x256xf32>
    %cst_17 = arith.constant 0.000000e+00 : f32
    %20 = vector.broadcast %cst_17 : f32 to vector<4x256xf32>
    %21 = arith.maximumf %19, %20 : vector<4x256xf32>
    %22 = vector.extract_strided_slice %10 {offsets = [0, 0], sizes = [8, 4], strides = [1, 1]} : vector<8x12xf32> to vector<8x4xf32>
    %cst_18 = arith.constant dense<0.000000e+00> : vector<8x256xf32>
    %23 = tpu.matmul %22, %21, %cst_18 {dimension_numbers = #tpu.dot_dimension_numbers<[1], [0], [0], [1], [0, 0, 1, 1], [], []>} : vector<8x4xf32>, vector<4x256xf32>, vector<8x256xf32> -> vector<8x256xf32>
    %24 = vector.extract_strided_slice %9 {offsets = [0, 2], sizes = [8, 1], strides = [1, 1]} : vector<16x8xf32> to vector<8x1xf32>
    %25 = vector.broadcast %24 : vector<8x1xf32> to vector<8x256xf32>
    %26 = arith.addf %23, %25 : vector<8x256xf32>
    %cst_19 = arith.constant 0.000000e+00 : f32
    %27 = vector.broadcast %cst_19 : f32 to vector<8x256xf32>
    %28 = arith.maximumf %26, %27 : vector<8x256xf32>
    %29 = vector.extract_strided_slice %11 {offsets = [0, 0], sizes = [4, 72], strides = [1, 1]} : vector<4x144xf32> to vector<4x72xf32>
    %30 = vector.extract_strided_slice %28 {offsets = [0, 0], sizes = [8, 222], strides = [1, 1]} : vector<8x256xf32> to vector<8x222xf32>
    %31 = vector.extract_strided_slice %28 {offsets = [0, 1], sizes = [8, 222], strides = [1, 1]} : vector<8x256xf32> to vector<8x222xf32>
    %32 = vector.extract_strided_slice %28 {offsets = [0, 2], sizes = [8, 222], strides = [1, 1]} : vector<8x256xf32> to vector<8x222xf32>
    %33 = vector.extract_strided_slice %28 {offsets = [0, 16], sizes = [8, 222], strides = [1, 1]} : vector<8x256xf32> to vector<8x222xf32>
    %34 = vector.extract_strided_slice %28 {offsets = [0, 17], sizes = [8, 222], strides = [1, 1]} : vector<8x256xf32> to vector<8x222xf32>
    %35 = vector.extract_strided_slice %28 {offsets = [0, 18], sizes = [8, 222], strides = [1, 1]} : vector<8x256xf32> to vector<8x222xf32>
    %36 = vector.extract_strided_slice %28 {offsets = [0, 32], sizes = [8, 222], strides = [1, 1]} : vector<8x256xf32> to vector<8x222xf32>
    %37 = vector.extract_strided_slice %28 {offsets = [0, 33], sizes = [8, 222], strides = [1, 1]} : vector<8x256xf32> to vector<8x222xf32>
    %38 = vector.extract_strided_slice %28 {offsets = [0, 34], sizes = [8, 222], strides = [1, 1]} : vector<8x256xf32> to vector<8x222xf32>
    %39 = tpu.concatenate %30, %31, %32, %33, %34, %35, %36, %37, %38 in 0 : vector<8x222xf32>, vector<8x222xf32>, vector<8x222xf32>, vector<8x222xf32>, vector<8x222xf32>, vector<8x222xf32>, vector<8x222xf32>, vector<8x222xf32>, vector<8x222xf32> -> vector<72x222xf32>
    %cst_20 = arith.constant dense<0.000000e+00> : vector<4x222xf32>
    %40 = tpu.matmul %29, %39, %cst_20 {dimension_numbers = #tpu.dot_dimension_numbers<[1], [0], [0], [1], [0, 0, 1, 1], [], []>} : vector<4x72xf32>, vector<72x222xf32>, vector<4x222xf32> -> vector<4x222xf32>
    %cst_21 = arith.constant 0.000000e+00 : f32
    %41 = vector.broadcast %cst_21 : f32 to vector<4x17xf32>
    %cst_22 = arith.constant 0.000000e+00 : f32
    %42 = vector.broadcast %cst_22 : f32 to vector<4x17xf32>
    %43 = tpu.concatenate %41, %40, %42 in 1 : vector<4x17xf32>, vector<4x222xf32>, vector<4x17xf32> -> vector<4x256xf32>
    %c0_23 = arith.constant 0 : index
    %c4 = arith.constant 4 : index
    %c0_24 = arith.constant 0 : index
    %44 = vector.load %arg5[%c0_23, %c4, %c0_24] : memref<1x16x256xf32, #tpu.memory_space<vmem>>, vector<1x4x256xf32>
    %45 = vector.shape_cast %44 : vector<1x4x256xf32> to vector<4x256xf32>
    %46 = vector.shape_cast %43 : vector<4x256xf32> to vector<1x4x256xf32>
    tpu.vector_store %arg5[%c0_23, %c4, %c0_24], %46 {strides = array<i32>} : memref<1x16x256xf32, #tpu.memory_space<vmem>>, vector<1x4x256xf32>,
    %c0_25 = arith.constant 0 : index
    %c0_26 = arith.constant 0 : index
    %c0_27 = arith.constant 0 : index
    %47 = vector.load %arg5[%c0_25, %c0_26, %c0_27] : memref<1x16x256xf32, #tpu.memory_space<vmem>>, vector<1x8x256xf32>
    %48 = vector.shape_cast %47 : vector<1x8x256xf32> to vector<8x256xf32>
    %49 = vector.extract_strided_slice %48 {offsets = [0, 17], sizes = [8, 222], strides = [1, 1]} : vector<8x256xf32> to vector<8x222xf32>
    %50 = vector.extract_strided_slice %9 {offsets = [0, 3], sizes = [8, 1], strides = [1, 1]} : vector<16x8xf32> to vector<8x1xf32>
    %51 = vector.extract_strided_slice %9 {offsets = [0, 4], sizes = [8, 1], strides = [1, 1]} : vector<16x8xf32> to vector<8x1xf32>
    %52 = vector.broadcast %50 : vector<8x1xf32> to vector<8x222xf32>
    %53 = arith.mulf %49, %52 : vector<8x222xf32>
    %54 = vector.broadcast %51 : vector<8x1xf32> to vector<8x222xf32>
    %55 = arith.addf %53, %54 : vector<8x222xf32>
    %cst_28 = arith.constant 0.000000e+00 : f32
    %56 = vector.broadcast %cst_28 : f32 to vector<8x222xf32>
    %57 = arith.maximumf %55, %56 : vector<8x222xf32>
    %58 = vector.extract_strided_slice %10 {offsets = [0, 4], sizes = [8, 8], strides = [1, 1]} : vector<8x12xf32> to vector<8x8xf32>
    %cst_29 = arith.constant dense<0.000000e+00> : vector<8x222xf32>
    %59 = tpu.matmul %58, %57, %cst_29 {dimension_numbers = #tpu.dot_dimension_numbers<[1], [0], [0], [1], [0, 0, 1, 1], [], []>} : vector<8x8xf32>, vector<8x222xf32>, vector<8x222xf32> -> vector<8x222xf32>
    %60 = vector.extract_strided_slice %9 {offsets = [0, 5], sizes = [8, 1], strides = [1, 1]} : vector<16x8xf32> to vector<8x1xf32>
    %61 = vector.broadcast %60 : vector<8x1xf32> to vector<8x222xf32>
    %62 = arith.addf %59, %61 : vector<8x222xf32>
    %cst_30 = arith.constant 0.000000e+00 : f32
    %63 = vector.broadcast %cst_30 : f32 to vector<8x222xf32>
    %64 = arith.maximumf %62, %63 : vector<8x222xf32>
    %65 = vector.extract_strided_slice %11 {offsets = [0, 72], sizes = [4, 72], strides = [1, 1]} : vector<4x144xf32> to vector<4x72xf32>
    %66 = vector.extract_strided_slice %64 {offsets = [0, 0], sizes = [8, 188], strides = [1, 1]} : vector<8x222xf32> to vector<8x188xf32>
    %67 = vector.extract_strided_slice %64 {offsets = [0, 1], sizes = [8, 188], strides = [1, 1]} : vector<8x222xf32> to vector<8x188xf32>
    %68 = vector.extract_strided_slice %64 {offsets = [0, 2], sizes = [8, 188], strides = [1, 1]} : vector<8x222xf32> to vector<8x188xf32>
    %69 = vector.extract_strided_slice %64 {offsets = [0, 16], sizes = [8, 188], strides = [1, 1]} : vector<8x222xf32> to vector<8x188xf32>
    %70 = vector.extract_strided_slice %64 {offsets = [0, 17], sizes = [8, 188], strides = [1, 1]} : vector<8x222xf32> to vector<8x188xf32>
    %71 = vector.extract_strided_slice %64 {offsets = [0, 18], sizes = [8, 188], strides = [1, 1]} : vector<8x222xf32> to vector<8x188xf32>
    %72 = vector.extract_strided_slice %64 {offsets = [0, 32], sizes = [8, 188], strides = [1, 1]} : vector<8x222xf32> to vector<8x188xf32>
    %73 = vector.extract_strided_slice %64 {offsets = [0, 33], sizes = [8, 188], strides = [1, 1]} : vector<8x222xf32> to vector<8x188xf32>
    %74 = vector.extract_strided_slice %64 {offsets = [0, 34], sizes = [8, 188], strides = [1, 1]} : vector<8x222xf32> to vector<8x188xf32>
    %75 = tpu.concatenate %66, %67, %68, %69, %70, %71, %72, %73, %74 in 0 : vector<8x188xf32>, vector<8x188xf32>, vector<8x188xf32>, vector<8x188xf32>, vector<8x188xf32>, vector<8x188xf32>, vector<8x188xf32>, vector<8x188xf32>, vector<8x188xf32> -> vector<72x188xf32>
    %cst_31 = arith.constant dense<0.000000e+00> : vector<4x188xf32>
    %76 = tpu.matmul %65, %75, %cst_31 {dimension_numbers = #tpu.dot_dimension_numbers<[1], [0], [0], [1], [0, 0, 1, 1], [], []>} : vector<4x72xf32>, vector<72x188xf32>, vector<4x188xf32> -> vector<4x188xf32>
    %cst_32 = arith.constant 0.000000e+00 : f32
    %77 = vector.broadcast %cst_32 : f32 to vector<4x34xf32>
    %cst_33 = arith.constant 0.000000e+00 : f32
    %78 = vector.broadcast %cst_33 : f32 to vector<4x34xf32>
    %79 = tpu.concatenate %77, %76, %78 in 1 : vector<4x34xf32>, vector<4x188xf32>, vector<4x34xf32> -> vector<4x256xf32>
    %c0_34 = arith.constant 0 : index
    %c8 = arith.constant 8 : index
    %c0_35 = arith.constant 0 : index
    %80 = vector.load %arg5[%c0_34, %c8, %c0_35] : memref<1x16x256xf32, #tpu.memory_space<vmem>>, vector<1x4x256xf32>
    %81 = vector.shape_cast %80 : vector<1x4x256xf32> to vector<4x256xf32>
    %82 = vector.shape_cast %79 : vector<4x256xf32> to vector<1x4x256xf32>
    tpu.vector_store %arg5[%c0_34, %c8, %c0_35], %82 {strides = array<i32>} : memref<1x16x256xf32, #tpu.memory_space<vmem>>, vector<1x4x256xf32>,
    %83 = vector.extract_strided_slice %9 {offsets = [0, 6], sizes = [16, 1], strides = [1, 1]} : vector<16x8xf32> to vector<16x1xf32>
    %84 = vector.extract_strided_slice %9 {offsets = [0, 7], sizes = [16, 1], strides = [1, 1]} : vector<16x8xf32> to vector<16x1xf32>
    %c0_36 = arith.constant 0 : index
    %c0_37 = arith.constant 0 : index
    %c0_38 = arith.constant 0 : index
    %85 = vector.load %arg5[%c0_36, %c0_37, %c0_38] : memref<1x16x256xf32, #tpu.memory_space<vmem>>, vector<1x16x256xf32>
    %86 = vector.shape_cast %85 : vector<1x16x256xf32> to vector<16x256xf32>
    %87 = vector.broadcast %83 : vector<16x1xf32> to vector<16x256xf32>
    %88 = arith.mulf %86, %87 : vector<16x256xf32>
    %89 = vector.broadcast %84 : vector<16x1xf32> to vector<16x256xf32>
    %90 = arith.addf %88, %89 : vector<16x256xf32>
    %cst_39 = arith.constant 0.000000e+00 : f32
    %91 = vector.broadcast %cst_39 : f32 to vector<16x256xf32>
    %92 = arith.maximumf %90, %91 : vector<16x256xf32>
    %c0_40 = arith.constant 0 : index
    %c0_41 = arith.constant 0 : index
    %c0_42 = arith.constant 0 : index
    %93 = vector.load %arg5[%c0_40, %c0_41, %c0_42] : memref<1x16x256xf32, #tpu.memory_space<vmem>>, vector<1x16x256xf32>
    %94 = vector.shape_cast %93 : vector<1x16x256xf32> to vector<16x256xf32>
    %95 = vector.shape_cast %92 : vector<16x256xf32> to vector<1x16x256xf32>
    tpu.vector_store %arg5[%c0_40, %c0_41, %c0_42], %95 {strides = array<i32>} : memref<1x16x256xf32, #tpu.memory_space<vmem>>, vector<1x16x256xf32>,
    return
  }
  func.func @transform_0(%arg0: i32) -> (i32, i32, i32) {
    %c0_i32 = arith.constant 0 : i32
    %c0_i32_0 = arith.constant 0 : i32
    %c0_i32_1 = arith.constant 0 : i32
    return %arg0, %c0_i32, %c0_i32_0 : i32, i32, i32
  }
  func.func @transform_1(%arg0: i32) -> (i32, i32) {
    %c0_i32 = arith.constant 0 : i32
    %c0_i32_0 = arith.constant 0 : i32
    %c0_i32_1 = arith.constant 0 : i32
    return %c0_i32, %c0_i32_0 : i32, i32
  }
  func.func @transform_2(%arg0: i32) -> (i32, i32) {
    %c0_i32 = arith.constant 0 : i32
    %c0_i32_0 = arith.constant 0 : i32
    %c0_i32_1 = arith.constant 0 : i32
    return %c0_i32, %c0_i32_0 : i32, i32
  }
  func.func @transform_3(%arg0: i32) -> (i32, i32) {
    %c0_i32 = arith.constant 0 : i32
    %c0_i32_0 = arith.constant 0 : i32
    %c0_i32_1 = arith.constant 0 : i32
    return %c0_i32, %c0_i32_0 : i32, i32
  }
  func.func @transform_4(%arg0: i32) -> (i32, i32, i32) {
    %c0_i32 = arith.constant 0 : i32
    %c0_i32_0 = arith.constant 0 : i32
    %c0_i32_1 = arith.constant 0 : i32
    return %arg0, %c0_i32, %c0_i32_0 : i32, i32, i32
  }
}

</mosaic_0001>

<llo_original>
// kernel: dense_block_forward.1
$region0: #{dense_block_forward.1}
  #allocation0 [shape = 'u32[]', space=smem, size = 0x4, offset = 0x4, fixed_abs, tag = 'smem constant byte address 0x4 - core index']
  #allocation1 [shape = 'u32[144,128]{1,0:T(1,128)}', space=vmem, size = 0x12000, scoped, tag = 'internal scratch']
  %s0 = inlined_call_operand.vmem [shape: f32[2,4,256], index: 0, kind: input, shape index: {}]
  %s1 = inlined_call_operand.vmem [shape: f32[16,8], index: 1, kind: input, shape index: {}]
  %s2 = inlined_call_operand.vmem [shape: f32[8,12], index: 2, kind: input, shape index: {}]
  %s3 = inlined_call_operand.vmem [shape: f32[4,144], index: 3, kind: input, shape index: {}]
  %s4 = inlined_call_operand.vmem [shape: f32[2,16,256], index: 4, kind: output, shape index: {}]
  %s5 = sld [smem:[#allocation0]]
  $region49: #{dense_block_forward.1} parent=0
    _
  %s7 = ssub.s32 1, %s5
  %s8 = scalar_select 0, %s7, %s5
  loop: start=0, step=1, limit=4
  $region2: #{dense_block_forward.1} parent=0 // loop_pre_header
    _
  $region3: #{dense_block_forward.1} parent=0 // loop_header
    %s10 = sphi 0, %s14
    %p11 = scmp.ge.s32.totalorder %s10, 4
    %s20 = sphi 0, %s22
    %s23 = sphi 0, %s20
    %s24 = sphi 0, %s23
    %s40 = sphi 0, %s24
    %s44 = sphi 0, %s44
    %s46 = sphi 0, %s44
    %s47 = sphi 0, %s46
    %s61 = sphi 0, %s47
    %s65 = sphi 0, %s65
    %s67 = sphi 0, %s65
    %s68 = sphi 0, %s67
    %s82 = sphi 0, %s68
    %s86 = sphi 0, %s86
    %s88 = sphi 0, %s86
    %s89 = sphi 0, %s88
    %s103 = sphi 0, %s89
    %s109 = sphi 0, %s111
    %s112 = sphi 0, %s109
    %s113 = sphi 0, %s112
    %s129 = sphi 0, %s113
  $region4: #{dense_block_forward.1} parent=0 // loop_header_branch
    %13 = sbr.rel (%p11) target = $region8
  $region5: #{dense_block_forward.1} parent=0 // loop_body
    %s15 = ssub.s32 %s10, 1
    %s16 = ssub.s32 %s10, 2
    %s17 = sadd.s32 %s10, 1
    %s18 = ssub.s32 %s10, %s17
    %p19 = scmp.eq.s32.totalorder %s18, 0
    %s21 = sadd.s32 %s20, 1
    %s22 = scalar_select %p19, %s20, %s21
    %p25 = pneg %p19
    %p26 = scmp.eq.s32.totalorder %s10, 1
    %p27 = por %p25, %p26
    %p28 = scmp.ne.s32.totalorder %s20, %s23
    %p29 = scmp.eq.s32.totalorder %s10, 0
    %p30 = por %p28, %p29
    %p31 = scmp.ne.s32.totalorder %s20, %s23
    %p32 = scmp.eq.s32.totalorder %s15, 1
    %p33 = por %p31, %p32
    %p34 = scmp.ne.s32.totalorder %s23, %s24
    %p35 = scmp.eq.s32.totalorder %s15, 0
    %p36 = por %p34, %p35
    %p37 = scmp.ne.s32.totalorder %s23, %s24
    %p38 = scmp.eq.s32.totalorder %s16, 1
    %p39 = por %p37, %p38
    %p41 = scmp.ne.s32.totalorder %s24, %s40
    %p42 = scmp.eq.s32.totalorder %s16, 0
    %p43 = por %p41, %p42
    %s45 = sadd.s32 %s44, 1
    %p48 = scmp.eq.s32.totalorder %s10, 1
    %p49 = scmp.ne.s32.totalorder %s44, %s46
    %p50 = scmp.eq.s32.totalorder %s10, 0
    %p51 = por %p49, %p50
    %p52 = scmp.ne.s32.totalorder %s44, %s46
    %p53 = scmp.eq.s32.totalorder %s15, 1
    %p54 = por %p52, %p53
    %p55 = scmp.ne.s32.totalorder %s46, %s47
    %p56 = scmp.eq.s32.totalorder %s15, 0
    %p57 = por %p55, %p56
    %p58 = scmp.ne.s32.totalorder %s46, %s47
    %p59 = scmp.eq.s32.totalorder %s16, 1
    %p60 = por %p58, %p59
    %p62 = scmp.ne.s32.totalorder %s47, %s61
    %p63 = scmp.eq.s32.totalorder %s16, 0
    %p64 = por %p62, %p63
    %s66 = sadd.s32 %s65, 1
    %p69 = scmp.eq.s32.totalorder %s10, 1
    %p70 = scmp.ne.s32.totalorder %s65, %s67
    %p71 = scmp.eq.s32.totalorder %s10, 0
    %p72 = por %p70, %p71
    %p73 = scmp.ne.s32.totalorder %s65, %s67
    %p74 = scmp.eq.s32.totalorder %s15, 1
    %p75 = por %p73, %p74
    %p76 = scmp.ne.s32.totalorder %s67, %s68
    %p77 = scmp.eq.s32.totalorder %s15, 0
    %p78 = por %p76, %p77
    %p79 = scmp.ne.s32.totalorder %s67, %s68
    %p80 = scmp.eq.s32.totalorder %s16, 1
    %p81 = por %p79, %p80
    %p83 = scmp.ne.s32.totalorder %s68, %s82
    %p84 = scmp.eq.s32.totalorder %s16, 0
    %p85 = por %p83, %p84
    %s87 = sadd.s32 %s86, 1
    %p90 = scmp.eq.s32.totalorder %s10, 1
    %p91 = scmp.ne.s32.totalorder %s86, %s88
    %p92 = scmp.eq.s32.totalorder %s10, 0
    %p93 = por %p91, %p92
    %p94 = scmp.ne.s32.totalorder %s86, %s88
    %p95 = scmp.eq.s32.totalorder %s15, 1
    %p96 = por %p94, %p95
    %p97 = scmp.ne.s32.totalorder %s88, %s89
    %p98 = scmp.eq.s32.totalorder %s15, 0
    %p99 = por %p97, %p98
    %p100 = scmp.ne.s32.totalorder %s88, %s89
    %p101 = scmp.eq.s32.totalorder %s16, 1
    %p102 = por %p100, %p101
    %p104 = scmp.ne.s32.totalorder %s89, %s103
    %p105 = scmp.eq.s32.totalorder %s16, 0
    %p106 = por %p104, %p105
    %s107 = ssub.s32 %s10, %s17
    %p108 = scmp.eq.s32.totalorder %s107, 0
    %s110 = sadd.s32 %s109, 1
    %s111 = scalar_select %p108, %s109, %s110
    %p114 = pneg %p108
    %p115 = scmp.eq.s32.totalorder %s10, 1
    %p116 = por %p114, %p115
    %p117 = scmp.ne.s32.totalorder %s109, %s112
    %p118 = scmp.eq.s32.totalorder %s10, 0
    %p119 = por %p117, %p118
    %p120 = scmp.ne.s32.totalorder %s109, %s112
    %p121 = scmp.eq.s32.totalorder %s15, 1
    %p122 = por %p120, %p121
    %p123 = scmp.ne.s32.totalorder %s112, %s113
    %p124 = scmp.eq.s32.totalorder %s15, 0
    %p125 = por %p123, %p124
    %p126 = scmp.ne.s32.totalorder %s112, %s113
    %p127 = scmp.eq.s32.totalorder %s16, 1
    %p128 = por %p126, %p127
    %p130 = scmp.ne.s32.totalorder %s113, %s129
    %p131 = scmp.eq.s32.totalorder %s16, 0
    %p132 = por %p130, %p131
    %p133 = scmp.le.s32.totalorder 1, %s10
    %p134 = scmp.lt.s32.totalorder %s10, 3
    %p135 = pnand %p133, %p134
    %p136 = pneg %p135
    // Predicated region
    $region9: #{dense_block_forward.1} parent=5 // pred_check
      _
    $region10: #{dense_block_forward.1} parent=5 // pred_check_branch
      %138 = sbr.rel (%p135) target = $region12
    $region11: #{dense_block_forward.1} parent=5 // pred_region
      %s139 = ssub.s32 %s10, 1
      // Predicated region
      $region13: #{dense_block_forward.1} parent=11 // pred_check
        %p140 = pneg %p57
      $region14: #{dense_block_forward.1} parent=11 // pred_check_branch
        %142 = sbr.rel (%p140) target = $region16
      $region15: #{dense_block_forward.1} parent=11 // pred_region
        _
      $region16: #{dense_block_forward.1} parent=11 // pred_fallthru
        _
      // Predicated region
      $region17: #{dense_block_forward.1} parent=11 // pred_check
        %p143 = pneg %p78
      $region18: #{dense_block_forward.1} parent=11 // pred_check_branch
        %145 = sbr.rel (%p143) target = $region20
      $region19: #{dense_block_forward.1} parent=11 // pred_region
        _
      $region20: #{dense_block_forward.1} parent=11 // pred_fallthru
        _
      // Predicated region
      $region21: #{dense_block_forward.1} parent=11 // pred_check
        %p146 = pneg %p99
      $region22: #{dense_block_forward.1} parent=11 // pred_check_branch
        %148 = sbr.rel (%p146) target = $region24
      $region23: #{dense_block_forward.1} parent=11 // pred_region
        _
      $region24: #{dense_block_forward.1} parent=11 // pred_fallthru
        _
    $region12: #{dense_block_forward.1} parent=5 // pred_fallthru
      _
    %p149 = scmp.lt.s32.totalorder %s10, 2
    // Predicated region
    $region25: #{dense_block_forward.1} parent=5 // pred_check
      %p150 = pneg %p149
    $region26: #{dense_block_forward.1} parent=5 // pred_check_branch
      %152 = sbr.rel (%p150) target = $region28
    $region27: #{dense_block_forward.1} parent=5 // pred_region
      // Predicated region
      $region29: #{dense_block_forward.1} parent=27 // pred_check
        %p153 = pneg %p30
      $region30: #{dense_block_forward.1} parent=27 // pred_check_branch
        %155 = sbr.rel (%p153) target = $region32
      $region31: #{dense_block_forward.1} parent=27 // pred_region
        %p156 = scmp.lt.s32.totalorder %s10, 1
        %s157 = scalar_select %p156, %s10, 1
        %s158 = smul.addr %s157, 2
        %s159 = smul.addr %s158, 4
        %s160 = scalar_lea.vmem %s0, %s159
      $region32: #{dense_block_forward.1} parent=27 // pred_fallthru
        _
    $region28: #{dense_block_forward.1} parent=5 // pred_fallthru
      _
    %p161 = scmp.le.s32.totalorder 1, %s10
    %p162 = scmp.lt.s32.totalorder %s10, 3
    %p163 = pnand %p161, %p162
    %p164 = pneg %p163
    // Predicated region
    $region33: #{dense_block_forward.1} parent=5 // pred_check
      _
    $region34: #{dense_block_forward.1} parent=5 // pred_check_branch
      %166 = sbr.rel (%p163) target = $region36
    $region35: #{dense_block_forward.1} parent=5 // pred_region
      %s167 = ssub.s32 %s10, 1
      %p168 = scmp.lt.s32.totalorder %s15, 1
      %s169 = scalar_select %p168, %s15, 1
      %s170 = smul.addr %s169, 2
      %s171 = smul.addr %s170, 4
      %s172 = scalar_lea.vmem %s0, %s171
      %p173 = pneg %p36
      %p174 = pneg %p33
      %p175 = pneg %p57
      %p176 = pneg %p54
      %p177 = pneg %p78
      %p178 = pneg %p75
      %p179 = pneg %p99
      %p180 = pneg %p96
      %p181 = pneg %p125
      %p182 = pneg %p122
      %p183 = scmp.lt.s32.totalorder %s15, 1
      %s184 = scalar_select %p183, %s15, 1
      %s185 = smul.addr %s184, 4
      %s186 = smul.addr %s185, 8
      %s187 = scalar_lea.vmem %s4, %s186
      %p188 = scmp.lt.s32.totalorder %s15, 1
      %s189 = scalar_select %p188, %s15, 1
      %s190 = smul.addr %s189, 2
      %s191 = smul.addr %s190, 4
      %s192 = scalar_lea.vmem %s0, %s191
      %p193 = scmp.lt.s32.totalorder %s15, 1
      %s194 = scalar_select %p193, %s15, 1
      %s195 = smul.addr %s194, 4
      %s196 = smul.addr %s195, 8
      %s197 = scalar_lea.vmem %s4, %s196
      %198 = vst [vmem:[%s197] sm:$0xff] 0.0
      %199 = vst [vmem:[%s197 + $0x8] sm:$0xff] 0.0
      %200 = vst [vmem:[%s197 + $0x10] sm:$0xff] 0.0
      %201 = vst [vmem:[%s197 + $0x18] sm:$0xff] 0.0
      %v202 = vld [vmem:[%s192] sm:$0xff]
      %v204 = vcombine.high %v202, %v202
      %206 = vst [vmem:[%s197] sm:$0xf] %v202
      %207 = vst [vmem:[%s197 + $0x8] sm:$0xf] %v204
      %v208 = vld [vmem:[%s1] sm:$0xff]
      %v209 = vld [vmem:[%s1 + $0x8] sm:$0xff]
      %v210 = vld [vmem:[%s2] sm:$0xff]
      %v211 = vld [vmem:[%s3] sm:$0xff]
      %v212 = vld [vmem:[%s197] sm:$0xf]
      %v213 = vld [vmem:[%s197 + $0x8] sm:$0xf]
      %215 = vset.pattern.permute.xlu0 0
      %216 = vperm.xlu0 %215, %v208
      %v217 = vpop.permute.xlu0 %216
      %v219 = vmul.f32 %v212, %v217
      %v220 = vmul.f32 %v213, %v217
      %221 = vset.pattern.permute.xlu0 1
      %222 = vperm.xlu0 %221, %v208
      %v223 = vpop.permute.xlu0 %222
      %v225 = vadd.f32 %v219, %v223
      %v226 = vadd.f32 %v220, %v223
      %v227 = vmax.f32 %v225, 0.0
      %v228 = vmax.f32 %v226, 0.0
      %229 = vset.pattern.permute.xlu0 2
      %230 = vperm.xlu0 %229, %v208
      %v231 = vpop.permute.xlu0 %230
      %vm233 = vcmask 31744
      %v235 = vsel %vm233, %v210, 0
      %vm237 = vcmask 1043456
      %v239 = vsel %vm237, %v227, 0
      %v242 = vsel %vm237, %v228, 0
      %244 = vmatprep.subr.mxu0 0.0
      %245 = vmatpush1.msra.mxu0 0.0
      %246 = vmatprep.subr.mxu0 0.0
      %247 = vmatpush1.msra.mxu0 0.0
      %248 = vmatprep.subr.mxu0 0.0
      %249 = vmatpush1.msra.mxu0 0.0
      %250 = vmatprep.subr.mxu0 0.0
      %251 = vmatpush1.msra.mxu0 0.0
      %252 = vmatprep.subr.mxu0 0.0
      %253 = vmatpush1.msra.mxu0 0.0
      %254 = vmatprep.subr.mxu0 0.0
      %255 = vmatpush1.msra.mxu0 0.0
      %256 = vmatprep.subr.mxu0 0.0
      %257 = vmatpush1.msra.mxu0 0.0
      %258 = vmatprep.subr.mxu0 0.0
      %259 = vmatpush1.msra.mxu0 0.0
      %260 = vmatprep.subr.mxu0 0.0
      %261 = vmatpush1.msra.mxu0 0.0
      %262 = vmatprep.subr.mxu0 0.0
      %263 = vmatpush1.msra.mxu0 0.0
      %264 = vmatprep.subr.mxu0 0.0
      %265 = vmatpush1.msra.mxu0 0.0
      %266 = vmatprep.subr.mxu0 0.0
      %267 = vmatpush1.msra.mxu0 0.0
      %268 = vmatprep.subr.mxu0 0.0
      %269 = vmatpush1.msra.mxu0 0.0
      %270 = vmatprep.subr.mxu0 0.0
      %271 = vmatpush1.msra.mxu0 0.0
      %272 = vmatprep.subr.mxu0 0.0
      %273 = vmatpush1.msra.mxu0 0.0
      %274 = vmatprep.subr.mxu0 %v242
      %275 = vmatpush1.msra.mxu0 %v239
      %276 = vmatprep.subr.mxu0 0.0
      %277 = vmatpush2.msra.mxu0 0.0
      %278 = vmatprep.subr.mxu0 0.0
      %279 = vmatpush2.msra.mxu0 0.0
      %280 = vmatprep.subr.mxu0 0.0
      %281 = vmatpush2.msra.mxu0 0.0
      %282 = vmatprep.subr.mxu0 0.0
      %283 = vmatpush2.msra.mxu0 0.0
      %284 = vmatprep.subr.mxu0 0.0
      %285 = vmatpush2.msra.mxu0 0.0
      %286 = vmatprep.subr.mxu0 0.0
      %287 = vmatpush2.msra.mxu0 0.0
      %288 = vmatprep.subr.mxu0 0.0
      %289 = vmatpush2.msra.mxu0 0.0
      %290 = vmatprep.subr.mxu0 0.0
      %291 = vmatpush2.msra.mxu0 0.0
      %292 = vmatprep.subr.mxu0 0.0
      %293 = vmatpush2.msra.mxu0 0.0
      %294 = vmatprep.subr.mxu0 0.0
      %295 = vmatpush2.msra.mxu0 0.0
      %296 = vmatprep.subr.mxu0 0.0
      %297 = vmatpush2.msra.mxu0 0.0
      %298 = vmatprep.subr.mxu0 0.0
      %299 = vmatpush2.msra.mxu0 0.0
      %300 = vmatprep.subr.mxu0 0.0
      %301 = vmatpush2.msra.mxu0 0.0
      %302 = vmatprep.subr.mxu0 0.0
      %303 = vmatpush2.msra.mxu0 0.0
      %304 = vmatprep.subr.mxu0 0.0
      %305 = vmatpush2.msra.mxu0 0.0
      %306 = vmatprep.subr.mxu0 0.0
      %307 = vmatpush2.msra.mxu0 0.0
      %308 = vmatprep.mubr.f32.mxu0 0.0
      %309 = vmatmul.mubr.f32.gmra.mxu0 %v235
      %v310 = vpop.f32.mrf.mxu0
      %v311 = vadd.f32 %v231, %v310
      %v312 = vpop.f32.mrf.mxu0
      %v313 = vadd.f32 %v231, %v312
      %314 = vdwg.mxu0
      %v315 = vmax.f32 %v311, 0.0
      %v316 = vmax.f32 %v313, 0.0
      %319 = vrot.lane.b32.xlu0 %v315, 127
      %v320 = vpop.permute.xlu0 %319
      %321 = vrot.lane.b32.xlu0 %v316, 127
      %v322 = vpop.permute.xlu0 %321
      %vm323 = vcmask 1039360
      %v324 = vsel %vm323, %v320, %v322
      %327 = vrot.lane.b32.xlu0 %v315, 126
      %v328 = vpop.permute.xlu0 %327
      %329 = vrot.lane.b32.xlu0 %v316, 126
      %v330 = vpop.permute.xlu0 %329
      %vm331 = vcmask 1031168
      %v332 = vsel %vm331, %v328, %v330
      %335 = vrot.lane.b32.xlu0 %v315, 112
      %v336 = vpop.permute.xlu0 %335
      %337 = vrot.lane.b32.xlu0 %v316, 112
      %v338 = vpop.permute.xlu0 %337
      %vm339 = vcmask 916480
      %v340 = vsel %vm339, %v336, %v338
      %343 = vrot.lane.b32.xlu0 %v315, 111
      %v344 = vpop.permute.xlu0 %343
      %345 = vrot.lane.b32.xlu0 %v316, 111
      %v346 = vpop.permute.xlu0 %345
      %vm347 = vcmask 908288
      %v348 = vsel %vm347, %v344, %v346
      %351 = vrot.lane.b32.xlu0 %v315, 110
      %v352 = vpop.permute.xlu0 %351
      %353 = vrot.lane.b32.xlu0 %v316, 110
      %v354 = vpop.permute.xlu0 %353
      %vm355 = vcmask 900096
      %v356 = vsel %vm355, %v352, %v354
      %359 = vrot.lane.b32.xlu0 %v315, 96
      %v360 = vpop.permute.xlu0 %359
      %361 = vrot.lane.b32.xlu0 %v316, 96
      %v362 = vpop.permute.xlu0 %361
      %vm363 = vcmask 785408
      %v364 = vsel %vm363, %v360, %v362
      %367 = vrot.lane.b32.xlu0 %v315, 95
      %v368 = vpop.permute.xlu0 %367
      %369 = vrot.lane.b32.xlu0 %v316, 95
      %v370 = vpop.permute.xlu0 %369
      %vm371 = vcmask 777216
      %v372 = vsel %vm371, %v368, %v370
      %375 = vrot.lane.b32.xlu0 %v315, 94
      %v376 = vpop.permute.xlu0 %375
      %377 = vrot.lane.b32.xlu0 %v316, 94
      %v378 = vpop.permute.xlu0 %377
      %vm379 = vcmask 769024
      %v380 = vsel %vm379, %v376, %v378
      %vm383 = vcmask 588800
      %v385 = vsel %vm383, %v211, 0
      %387 = vmatprep.subr.mxu0 0.0
      %388 = vmatpush1.msra.mxu0 0.0
      %389 = vmatprep.subr.mxu0 0.0
      %390 = vmatpush1.msra.mxu0 0.0
      %391 = vmatprep.subr.mxu0 0.0
      %392 = vmatpush1.msra.mxu0 0.0
      %393 = vmatprep.subr.mxu0 0.0
      %394 = vmatpush1.msra.mxu0 0.0
      %395 = vmatprep.subr.mxu0 0.0
      %396 = vmatpush1.msra.mxu0 0.0
      %397 = vmatprep.subr.mxu0 0.0
      %398 = vmatpush1.msra.mxu0 0.0
      %399 = vmatprep.subr.mxu0 0.0
      %400 = vmatpush1.msra.mxu0 0.0
      %401 = vmatprep.subr.mxu0 %v378
      %402 = vmatpush1.msra.mxu0 %v380
      %403 = vmatprep.subr.mxu0 %v370
      %404 = vmatpush1.msra.mxu0 %v372
      %405 = vmatprep.subr.mxu0 %v362
      %406 = vmatpush1.msra.mxu0 %v364
      %407 = vmatprep.subr.mxu0 %v354
      %408 = vmatpush1.msra.mxu0 %v356
      %409 = vmatprep.subr.mxu0 %v346
      %410 = vmatpush1.msra.mxu0 %v348
      %411 = vmatprep.subr.mxu0 %v338
      %412 = vmatpush1.msra.mxu0 %v340
      %413 = vmatprep.subr.mxu0 %v330
      %414 = vmatpush1.msra.mxu0 %v332
      %415 = vmatprep.subr.mxu0 %v322
      %416 = vmatpush1.msra.mxu0 %v324
      %417 = vmatprep.subr.mxu0 %v316
      %418 = vmatpush1.msra.mxu0 %v315
      %419 = vmatprep.subr.mxu0 0.0
      %420 = vmatpush2.msra.mxu0 0.0
      %421 = vmatprep.subr.mxu0 0.0
      %422 = vmatpush2.msra.mxu0 0.0
      %423 = vmatprep.subr.mxu0 0.0
      %424 = vmatpush2.msra.mxu0 0.0
      %425 = vmatprep.subr.mxu0 0.0
      %426 = vmatpush2.msra.mxu0 0.0
      %427 = vmatprep.subr.mxu0 0.0
      %428 = vmatpush2.msra.mxu0 0.0
      %429 = vmatprep.subr.mxu0 0.0
      %430 = vmatpush2.msra.mxu0 0.0
      %431 = vmatprep.subr.mxu0 0.0
      %432 = vmatpush2.msra.mxu0 0.0
      %433 = vmatprep.subr.mxu0 0.0
      %434 = vmatpush2.msra.mxu0 0.0
      %435 = vmatprep.subr.mxu0 0.0
      %436 = vmatpush2.msra.mxu0 0.0
      %437 = vmatprep.subr.mxu0 0.0
      %438 = vmatpush2.msra.mxu0 0.0
      %439 = vmatprep.subr.mxu0 0.0
      %440 = vmatpush2.msra.mxu0 0.0
      %441 = vmatprep.subr.mxu0 0.0
      %442 = vmatpush2.msra.mxu0 0.0
      %443 = vmatprep.subr.mxu0 0.0
      %444 = vmatpush2.msra.mxu0 0.0
      %445 = vmatprep.subr.mxu0 0.0
      %446 = vmatpush2.msra.mxu0 0.0
      %447 = vmatprep.subr.mxu0 0.0
      %448 = vmatpush2.msra.mxu0 0.0
      %449 = vmatprep.subr.mxu0 0.0
      %450 = vmatpush2.msra.mxu0 0.0
      %451 = vmatprep.mubr.f32.mxu0 0.0
      %452 = vmatmul.mubr.f32.gmra.mxu0 %v385
      %v453 = vpop.f32.mrf.mxu0
      %v454 = vadd.f32 0.0, %v453
      %v455 = vpop.f32.mrf.mxu0
      %v456 = vadd.f32 0.0, %v455
      %457 = vdwg.mxu0
      %460 = vrot.lane.b32.xlu0 %v454, 17
      %v461 = vpop.permute.xlu0 %460
      %462 = vrot.lane.b32.xlu0 %v456, 17
      %v463 = vpop.permute.xlu0 %462
      %vm464 = vcmask 138240
      %v465 = vsel %vm464, %v461, %v463
      %v468 = vsel %vm464, 0.0, %v461
      %v469 = vsel %vm347, %v465, 0.0
      %v472 = vrot.slane %v468, 4
      %v473 = vrot.slane %v469, 4
      %476 = vst [vmem:[%s197] sm:$0xf0] %v472
      %477 = vst [vmem:[%s197 + $0x8] sm:$0xf0] %v473
      %v478 = vld [vmem:[%s197] sm:$0xff]
      %v479 = vld [vmem:[%s197 + $0x8] sm:$0xff]
      %480 = vset.pattern.permute.xlu0 3
      %481 = vperm.xlu0 %480, %v208
      %v482 = vpop.permute.xlu0 %481
      %v484 = vmul.f32 %v478, %v482
      %v485 = vmul.f32 %v479, %v482
      %486 = vset.pattern.permute.xlu0 4
      %487 = vperm.xlu0 %486, %v208
      %v488 = vpop.permute.xlu0 %487
      %v490 = vadd.f32 %v484, %v488
      %v491 = vadd.f32 %v485, %v488
      %v492 = vmax.f32 %v490, 0.0
      %v493 = vmax.f32 %v491, 0.0
      %494 = vset.pattern.permute.xlu0 5
      %495 = vperm.xlu0 %494, %v208
      %v496 = vpop.permute.xlu0 %495
      %498 = vrot.lane.b32.xlu0 %v210, 124
      %v499 = vpop.permute.xlu0 %498
      %502 = vrot.lane.b32.xlu0 %v492, 111
      %v503 = vpop.permute.xlu0 %502
      %504 = vrot.lane.b32.xlu0 %v493, 111
      %v505 = vpop.permute.xlu0 %504
      %v506 = vsel %vm347, %v503, %v505
      %vm509 = vcmask 64512
      %v510 = vsel %vm509, %v499, 0
      %512 = vmatprep.subr.mxu0 0.0
      %513 = vmatpush1.msra.mxu0 0.0
      %514 = vmatprep.subr.mxu0 0.0
      %515 = vmatpush1.msra.mxu0 0.0
      %516 = vmatprep.subr.mxu0 0.0
      %517 = vmatpush1.msra.mxu0 0.0
      %518 = vmatprep.subr.mxu0 0.0
      %519 = vmatpush1.msra.mxu0 0.0
      %520 = vmatprep.subr.mxu0 0.0
      %521 = vmatpush1.msra.mxu0 0.0
      %522 = vmatprep.subr.mxu0 0.0
      %523 = vmatpush1.msra.mxu0 0.0
      %524 = vmatprep.subr.mxu0 0.0
      %525 = vmatpush1.msra.mxu0 0.0
      %526 = vmatprep.subr.mxu0 0.0
      %527 = vmatpush1.msra.mxu0 0.0
      %528 = vmatprep.subr.mxu0 0.0
      %529 = vmatpush1.msra.mxu0 0.0
      %530 = vmatprep.subr.mxu0 0.0
      %531 = vmatpush1.msra.mxu0 0.0
      %532 = vmatprep.subr.mxu0 0.0
      %533 = vmatpush1.msra.mxu0 0.0
      %534 = vmatprep.subr.mxu0 0.0
      %535 = vmatpush1.msra.mxu0 0.0
      %536 = vmatprep.subr.mxu0 0.0
      %537 = vmatpush1.msra.mxu0 0.0
      %538 = vmatprep.subr.mxu0 0.0
      %539 = vmatpush1.msra.mxu0 0.0
      %540 = vmatprep.subr.mxu0 0.0
      %541 = vmatpush1.msra.mxu0 0.0
      %542 = vmatprep.subr.mxu0 %v505
      %543 = vmatpush1.msra.mxu0 %v506
      %544 = vmatprep.subr.mxu0 0.0
      %545 = vmatpush2.msra.mxu0 0.0
      %546 = vmatprep.subr.mxu0 0.0
      %547 = vmatpush2.msra.mxu0 0.0
      %548 = vmatprep.subr.mxu0 0.0
      %549 = vmatpush2.msra.mxu0 0.0
      %550 = vmatprep.subr.mxu0 0.0
      %551 = vmatpush2.msra.mxu0 0.0
      %552 = vmatprep.subr.mxu0 0.0
      %553 = vmatpush2.msra.mxu0 0.0
      %554 = vmatprep.subr.mxu0 0.0
      %555 = vmatpush2.msra.mxu0 0.0
      %556 = vmatprep.subr.mxu0 0.0
      %557 = vmatpush2.msra.mxu0 0.0
      %558 = vmatprep.subr.mxu0 0.0
      %559 = vmatpush2.msra.mxu0 0.0
      %560 = vmatprep.subr.mxu0 0.0
      %561 = vmatpush2.msra.mxu0 0.0
      %562 = vmatprep.subr.mxu0 0.0
      %563 = vmatpush2.msra.mxu0 0.0
      %564 = vmatprep.subr.mxu0 0.0
      %565 = vmatpush2.msra.mxu0 0.0
      %566 = vmatprep.subr.mxu0 0.0
      %567 = vmatpush2.msra.mxu0 0.0
      %568 = vmatprep.subr.mxu0 0.0
      %569 = vmatpush2.msra.mxu0 0.0
      %570 = vmatprep.subr.mxu0 0.0
      %571 = vmatpush2.msra.mxu0 0.0
      %572 = vmatprep.subr.mxu0 0.0
      %573 = vmatpush2.msra.mxu0 0.0
      %574 = vmatprep.subr.mxu0 0.0
      %575 = vmatpush2.msra.mxu0 0.0
      %576 = vmatprep.mubr.f32.mxu0 0.0
      %577 = vmatmul.mubr.f32.gmra.mxu0 %v510
      %v578 = vpop.f32.mrf.mxu0
      %v579 = vadd.f32 %v496, %v578
      %v580 = vpop.f32.mrf.mxu0
      %v581 = vadd.f32 %v496, %v580
      %582 = vdwg.mxu0
      %v583 = vmax.f32 %v579, 0.0
      %v584 = vmax.f32 %v581, 0.0
      %587 = vrot.lane.b32.xlu0 %v583, 127
      %v588 = vpop.permute.xlu0 %587
      %589 = vrot.lane.b32.xlu0 %v584, 127
      %v590 = vpop.permute.xlu0 %589
      %v591 = vsel %vm323, %v588, %v590
      %594 = vrot.lane.b32.xlu0 %v583, 126
      %v595 = vpop.permute.xlu0 %594
      %596 = vrot.lane.b32.xlu0 %v584, 126
      %v597 = vpop.permute.xlu0 %596
      %v598 = vsel %vm331, %v595, %v597
      %601 = vrot.lane.b32.xlu0 %v583, 112
      %v602 = vpop.permute.xlu0 %601
      %603 = vrot.lane.b32.xlu0 %v584, 112
      %v604 = vpop.permute.xlu0 %603
      %v605 = vsel %vm339, %v602, %v604
      %608 = vrot.lane.b32.xlu0 %v583, 111
      %v609 = vpop.permute.xlu0 %608
      %610 = vrot.lane.b32.xlu0 %v584, 111
      %v611 = vpop.permute.xlu0 %610
      %v612 = vsel %vm347, %v609, %v611
      %615 = vrot.lane.b32.xlu0 %v583, 110
      %v616 = vpop.permute.xlu0 %615
      %617 = vrot.lane.b32.xlu0 %v584, 110
      %v618 = vpop.permute.xlu0 %617
      %v619 = vsel %vm355, %v616, %v618
      %622 = vrot.lane.b32.xlu0 %v583, 96
      %v623 = vpop.permute.xlu0 %622
      %624 = vrot.lane.b32.xlu0 %v584, 96
      %v625 = vpop.permute.xlu0 %624
      %v626 = vsel %vm363, %v623, %v625
      %629 = vrot.lane.b32.xlu0 %v583, 95
      %v630 = vpop.permute.xlu0 %629
      %631 = vrot.lane.b32.xlu0 %v584, 95
      %v632 = vpop.permute.xlu0 %631
      %v633 = vsel %vm371, %v630, %v632
      %636 = vrot.lane.b32.xlu0 %v583, 94
      %v637 = vpop.permute.xlu0 %636
      %638 = vrot.lane.b32.xlu0 %v584, 94
      %v639 = vpop.permute.xlu0 %638
      %v640 = vsel %vm379, %v637, %v639
      %v643 = vcombine.high %v211, %v211
      %644 = vrot.lane.b32.xlu0 %v211, 56
      %v645 = vpop.permute.xlu0 %644
      %646 = vrot.lane.b32.xlu0 %v643, 56
      %v647 = vpop.permute.xlu0 %646
      %vm648 = vcmask 457728
      %v649 = vsel %vm648, %v645, %v647
      %v650 = vsel %vm383, %v649, 0
      %652 = vmatprep.subr.mxu0 0.0
      %653 = vmatpush1.msra.mxu0 0.0
      %654 = vmatprep.subr.mxu0 0.0
      %655 = vmatpush1.msra.mxu0 0.0
      %656 = vmatprep.subr.mxu0 0.0
      %657 = vmatpush1.msra.mxu0 0.0
      %658 = vmatprep.subr.mxu0 0.0
      %659 = vmatpush1.msra.mxu0 0.0
      %660 = vmatprep.subr.mxu0 0.0
      %661 = vmatpush1.msra.mxu0 0.0
      %662 = vmatprep.subr.mxu0 0.0
      %663 = vmatpush1.msra.mxu0 0.0
      %664 = vmatprep.subr.mxu0 0.0
      %665 = vmatpush1.msra.mxu0 0.0
      %666 = vmatprep.subr.mxu0 %v639
      %667 = vmatpush1.msra.mxu0 %v640
      %668 = vmatprep.subr.mxu0 %v632
      %669 = vmatpush1.msra.mxu0 %v633
      %670 = vmatprep.subr.mxu0 %v625
      %671 = vmatpush1.msra.mxu0 %v626
      %672 = vmatprep.subr.mxu0 %v618
      %673 = vmatpush1.msra.mxu0 %v619
      %674 = vmatprep.subr.mxu0 %v611
      %675 = vmatpush1.msra.mxu0 %v612
      %676 = vmatprep.subr.mxu0 %v604
      %677 = vmatpush1.msra.mxu0 %v605
      %678 = vmatprep.subr.mxu0 %v597
      %679 = vmatpush1.msra.mxu0 %v598
      %680 = vmatprep.subr.mxu0 %v590
      %681 = vmatpush1.msra.mxu0 %v591
      %682 = vmatprep.subr.mxu0 %v584
      %683 = vmatpush1.msra.mxu0 %v583
      %684 = vmatprep.subr.mxu0 0.0
      %685 = vmatpush2.msra.mxu0 0.0
      %686 = vmatprep.subr.mxu0 0.0
      %687 = vmatpush2.msra.mxu0 0.0
      %688 = vmatprep.subr.mxu0 0.0
      %689 = vmatpush2.msra.mxu0 0.0
      %690 = vmatprep.subr.mxu0 0.0
      %691 = vmatpush2.msra.mxu0 0.0
      %692 = vmatprep.subr.mxu0 0.0
      %693 = vmatpush2.msra.mxu0 0.0
      %694 = vmatprep.subr.mxu0 0.0
      %695 = vmatpush2.msra.mxu0 0.0
      %696 = vmatprep.subr.mxu0 0.0
      %697 = vmatpush2.msra.mxu0 0.0
      %698 = vmatprep.subr.mxu0 0.0
      %699 = vmatpush2.msra.mxu0 0.0
      %700 = vmatprep.subr.mxu0 0.0
      %701 = vmatpush2.msra.mxu0 0.0
      %702 = vmatprep.subr.mxu0 0.0
      %703 = vmatpush2.msra.mxu0 0.0
      %704 = vmatprep.subr.mxu0 0.0
      %705 = vmatpush2.msra.mxu0 0.0
      %706 = vmatprep.subr.mxu0 0.0
      %707 = vmatpush2.msra.mxu0 0.0
      %708 = vmatprep.subr.mxu0 0.0
      %709 = vmatpush2.msra.mxu0 0.0
      %710 = vmatprep.subr.mxu0 0.0
      %711 = vmatpush2.msra.mxu0 0.0
      %712 = vmatprep.subr.mxu0 0.0
      %713 = vmatpush2.msra.mxu0 0.0
      %714 = vmatprep.subr.mxu0 0.0
      %715 = vmatpush2.msra.mxu0 0.0
      %716 = vmatprep.mubr.f32.mxu0 0.0
      %717 = vmatmul.mubr.f32.gmra.mxu0 %v650
      %v718 = vpop.f32.mrf.mxu0
      %v719 = vadd.f32 0.0, %v718
      %v720 = vpop.f32.mrf.mxu0
      %v721 = vadd.f32 0.0, %v720
      %722 = vdwg.mxu0
      %725 = vrot.lane.b32.xlu0 %v719, 34
      %v726 = vpop.permute.xlu0 %725
      %727 = vrot.lane.b32.xlu0 %v721, 34
      %v728 = vpop.permute.xlu0 %727
      %vm729 = vcmask 277504
      %v730 = vsel %vm729, %v726, %v728
      %v733 = vsel %vm729, 0.0, %v726
      %v734 = vsel %vm379, %v730, 0.0
      %735 = vst [vmem:[%s197 + $0x10] sm:$0xf] %v733
      %736 = vst [vmem:[%s197 + $0x18] sm:$0xf] %v734
      %v737 = vld [vmem:[%s197] sm:$0xff]
      %v738 = vld [vmem:[%s197 + $0x8] sm:$0xff]
      %v739 = vld [vmem:[%s197 + $0x10] sm:$0xff]
      %v740 = vld [vmem:[%s197 + $0x18] sm:$0xff]
      %741 = vset.pattern.permute.xlu0 6
      %742 = vperm.xlu0 %741, %v208
      %v743 = vpop.permute.xlu0 %742
      %746 = vset.pattern.permute.xlu0 6
      %747 = vperm.xlu0 %746, %v209
      %v748 = vpop.permute.xlu0 %747
      %v750 = vmul.f32 %v737, %v743
      %v751 = vmul.f32 %v738, %v743
      %v752 = vmul.f32 %v739, %v748
      %v753 = vmul.f32 %v740, %v748
      %754 = vset.pattern.permute.xlu0 7
      %755 = vperm.xlu0 %754, %v208
      %v756 = vpop.permute.xlu0 %755
      %758 = vset.pattern.permute.xlu0 7
      %759 = vperm.xlu0 %758, %v209
      %v760 = vpop.permute.xlu0 %759
      %v762 = vadd.f32 %v750, %v756
      %v763 = vadd.f32 %v751, %v756
      %v764 = vadd.f32 %v752, %v760
      %v765 = vadd.f32 %v753, %v760
      %v766 = vmax.f32 %v762, 0.0
      %v767 = vmax.f32 %v763, 0.0
      %v768 = vmax.f32 %v764, 0.0
      %v769 = vmax.f32 %v765, 0.0
      %770 = vst [vmem:[%s197] sm:$0xff] %v766
      %771 = vst [vmem:[%s197 + $0x8] sm:$0xff] %v767
      %772 = vst [vmem:[%s197 + $0x10] sm:$0xff] %v768
      %773 = vst [vmem:[%s197 + $0x18] sm:$0xff] %v769
      %p774 = scmp.lt.s32.totalorder %s15, 1
      %s775 = scalar_select %p774, %s15, 1
      %s776 = smul.addr %s775, 4
      %s777 = smul.addr %s776, 8
      %s778 = scalar_lea.vmem %s4, %s777
      // Predicated region
      $region37: #{dense_block_forward.1} parent=35 // pred_check
        %p779 = pneg %p122
      $region38: #{dense_block_forward.1} parent=35 // pred_check_branch
        %781 = sbr.rel (%p779) target = $region40
      $region39: #{dense_block_forward.1} parent=35 // pred_region
        _
      $region40: #{dense_block_forward.1} parent=35 // pred_fallthru
        _
    $region36: #{dense_block_forward.1} parent=5 // pred_fallthru
      _
    %p782 = scmp.le.s32.totalorder 2, %s10
    // Predicated region
    $region41: #{dense_block_forward.1} parent=5 // pred_check
      %p783 = pneg %p782
    $region42: #{dense_block_forward.1} parent=5 // pred_check_branch
      %785 = sbr.rel (%p783) target = $region44
    $region43: #{dense_block_forward.1} parent=5 // pred_region
      %s786 = ssub.s32 %s10, 2
      // Predicated region
      $region45: #{dense_block_forward.1} parent=43 // pred_check
        %p787 = pneg %p128
      $region46: #{dense_block_forward.1} parent=43 // pred_check_branch
        %789 = sbr.rel (%p787) target = $region48
      $region47: #{dense_block_forward.1} parent=43 // pred_region
        %p790 = scmp.lt.s32.totalorder %s16, 1
        %s791 = scalar_select %p790, %s16, 1
        %s792 = smul.addr %s791, 4
        %s793 = smul.addr %s792, 8
        %s794 = scalar_lea.vmem %s4, %s793
      $region48: #{dense_block_forward.1} parent=43 // pred_fallthru
        _
    $region44: #{dense_block_forward.1} parent=5 // pred_fallthru
      _
  $region6: #{dense_block_forward.1} parent=0 // loop_footer
    %s14 = sadd.s32 1, %s10
  $region7: #{dense_block_forward.1} parent=0 // loop_footer_branch
    %9 = sbr.rel target = $region3
  $region8: #{dense_block_forward.1} parent=0 // loop_exit
    _

</llo_original>
